<compile_context>
chip_gen: v6e
topology: v6e:2x2x1
jax: 0.10.0
libtpu: 0.0.40
codegen_flags: <defaults>
</compile_context>

<pallas_src>
import functools
import math

import jax
import jax.numpy as jnp
from jax.experimental import pallas as pl
from jax.experimental.pallas import tpu as pltpu


def _round_up(x, m):
    return (x + m - 1) // m * m


def _mlp_kernel(x1_ref, x2_ref, w1a_ref, w1b_ref, w1c_ref, b1_ref,
                w2_ref, b2_ref, w3_ref, b3_ref, o_ref, *, act_dtype):
    # x1_ref / x2_ref: [TM, dim1] f32 activation tiles (pipelined over the grid).
    # Weights: bf16 [in, out]; biases: f32 [1, out]; all VMEM-resident.
    x1 = x1_ref[...]
    x2 = x2_ref[...]
    x1b = x1.astype(jnp.bfloat16)
    x2b = x2.astype(jnp.bfloat16)
    xhb = (x1 * x2).astype(jnp.bfloat16)          # Hadamard fused in-kernel

    # fc1 = [x1 | x2 | x1*x2] @ w1  ==  three K=dim1 partial dots, one f32 acc.
    acc = jnp.dot(x1b, w1a_ref[...], preferred_element_type=jnp.float32)
    acc = acc + jnp.dot(x2b, w1b_ref[...], preferred_element_type=jnp.float32)
    acc = acc + jnp.dot(xhb, w1c_ref[...], preferred_element_type=jnp.float32)
    z = acc + b1_ref[...]

    # sigmoid(z) = 1 / (1 + exp(-z)); exp in bf16 on v6e/v7x (bf16 EUP),
    # f32 on v5e; reciprocal kept on the EUP (approx) instead of the VALU.
    e = jnp.exp((-z).astype(act_dtype)).astype(jnp.float32)
    h1 = pl.reciprocal(1.0 + e, approx=True)

    # fc2 + relu
    h2 = jnp.dot(h1.astype(jnp.bfloat16), w2_ref[...],
                 preferred_element_type=jnp.float32) + b2_ref[...]
    h2 = jnp.maximum(h2, 0.0)

    # fc3 (un-padded out_dim columns -> minimal HBM writeback)
    o = jnp.dot(h2.astype(jnp.bfloat16), w3_ref[...],
                preferred_element_type=jnp.float32) + b3_ref[...]
    o_ref[...] = o.astype(o_ref.dtype)


def affinity_merge_forward(x1, x2, params):
    """params: w1 [3*dim1, 8*dim3], b1 [8*dim3], w2 [8*dim3, 2*dim3],
    b2 [2*dim3], w3 [2*dim3, dim4], b3 [dim4].  Weights are [in, out]."""
    B, dim1 = x1.shape
    w1, b1 = params["w1"], params["b1"]
    w2, b2 = params["w2"], params["b2"]
    w3, b3 = params["w3"], params["b3"]
    h1_dim = w1.shape[1]          # 8*dim3
    h2_dim = w2.shape[1]          # 2*dim3
    out_dim = w3.shape[1]         # dim4

    # ---- batch tiling: >=2 tiles once B > 32 (v7x: 2 TCs), 16-row multiples,
    # bounded padding waste (no round-up to a full 512-row tile).
    b16 = _round_up(B, 16)
    n_tiles = 1 if b16 <= 32 else max(2, pl.cdiv(b16, 512))
    TM = _round_up(pl.cdiv(b16, n_tiles), 16)
    b_pad = TM * n_tiles

    if b_pad != B:
        x1 = jnp.pad(x1, ((0, b_pad - B), (0, 0)))
        x2 = jnp.pad(x2, ((0, b_pad - B), (0, 0)))

    # ---- fc1 weight split into its three K=dim1 blocks (so the concat /
    # Hadamard never touches HBM).  bf16 weights for the MXU.
    # (In production these casts would be done once outside the forward.)
    w1a = w1[:dim1].astype(jnp.bfloat16)
    w1b = w1[dim1:2 * dim1].astype(jnp.bfloat16)
    w1c = w1[2 * dim1:].astype(jnp.bfloat16)
    w2b = w2.astype(jnp.bfloat16)
    w3b = w3.astype(jnp.bfloat16)
    b1r = b1.reshape(1, h1_dim).astype(jnp.float32)
    b2r = b2.reshape(1, h2_dim).astype(jnp.float32)
    b3r = b3.reshape(1, out_dim).astype(jnp.float32)

    # bf16 elementwise path only where the EUP supports it (v6e / v7x).
    kind = jax.devices()[0].device_kind.lower()
    preferred_act = jnp.bfloat16 if any(t in kind for t in ("v6", "v7", "7x")) \
        else jnp.float32

    # ---- cost estimate (helps XLA schedule surrounding ops around the call)
    mm_flops = 2 * b_pad * (3 * dim1 * h1_dim + h1_dim * h2_dim + h2_dim * out_dim)
    cost = pl.CostEstimate(
        flops=mm_flops,
        transcendentals=2 * b_pad * h1_dim,                   # exp + rcp
        bytes_accessed=(2 * b_pad * dim1 * 4                  # x1, x2 (f32)
                        + 2 * (3 * dim1 * h1_dim + h1_dim * h2_dim
                               + h2_dim * out_dim)            # bf16 weights
                        + 4 * (h1_dim + h2_dim + out_dim)     # biases
                        + 4 * b_pad * out_dim))               # output

    def const_spec(shape, single_buffer):
        idx = lambda i: (0,) * len(shape)
        if single_buffer:
            try:
                # Constant index_map -> one resident buffer is enough; halves
                # weight VMEM (matters for large dim3 on v7x's 64 MiB VMEM).
                return pl.BlockSpec(shape, idx, pipeline_mode=pl.Buffered(1))
            except Exception:
                pass
        return pl.BlockSpec(shape, idx)

    def run(single_buffer_weights, act_dtype):
        kernel = functools.partial(_mlp_kernel, act_dtype=act_dtype)
        const = lambda shape: const_spec(shape, single_buffer_weights)
        call = pl.pallas_call(
            kernel,
            out_shape=jax.ShapeDtypeStruct((b_pad, out_dim), jnp.float32),
            grid=(n_tiles,),
            in_specs=[
                pl.BlockSpec((TM, dim1), lambda i: (i, 0)),   # x1 tile (pipelined)
                pl.BlockSpec((TM, dim1), lambda i: (i, 0)),   # x2 tile (pipelined)
                const((dim1, h1_dim)),                        # w1 rows for x1
                const((dim1, h1_dim)),                        # w1 rows for x2
                const((dim1, h1_dim)),                        # w1 rows for x1*x2
                const((1, h1_dim)),                           # b1
                const((h1_dim, h2_dim)),                      # w2
                const((1, h2_dim)),                           # b2
                const((h2_dim, out_dim)),                     # w3
                const((1, out_dim)),                          # b3
            ],
            out_specs=pl.BlockSpec((TM, out_dim), lambda i: (i, 0)),
            compiler_params=pltpu.CompilerParams(
                dimension_semantics=("parallel",),            # 2 TCs on v7x
                vmem_limit_bytes=60 * 1024 * 1024),
            cost_estimate=cost,
        )
        out = call(x1, x2, w1a, w1b, w1c, b1r, w2b, b2r, w3b, b3r)
        return jax.block_until_ready(out)

    # Preferred config first; fall back if Buffered(1) / bf16 elementwise are
    # unsupported by the local lowering (keeps the kernel runnable everywhere).
    configs = [(True, preferred_act), (False, preferred_act)]
    if preferred_act is not jnp.float32:
        configs.append((False, jnp.float32))
    out_full, last_err = None, None
    for single_buf, adt in configs:
        try:
            out_full = run(single_buf, adt)
            break
        except Exception as e:   # noqa: BLE001 - deliberate config fallback
            last_err = e
    if out_full is None:
        raise last_err

    return out_full[:B]


def init_params(key, dim1, dim3, dim4):
    """Deterministic init mirroring the PyTorch module's shapes.
    fc1/fc2 weights: xavier normal; fc3 weight + all biases: PyTorch Linear
    default uniform(-1/sqrt(fan_in), 1/sqrt(fan_in))."""
    in1, out1 = dim1 * 3, dim3 * 8
    in2, out2 = dim3 * 8, dim3 * 2
    in3, out3 = dim3 * 2, dim4
    k = jax.random.split(key, 6)

    def xavier_normal(kk, fan_in, fan_out):
        std = math.sqrt(2.0 / (fan_in + fan_out))
        return std * jax.random.normal(kk, (fan_in, fan_out), jnp.float32)

    def uniform_fan_in(kk, shape, fan_in):
        bound = 1.0 / math.sqrt(fan_in)
        return jax.random.uniform(kk, shape, jnp.float32, -bound, bound)

    return {
        "w1": xavier_normal(k[0], in1, out1),          # [in, out]
        "b1": uniform_fan_in(k[1], (out1,), in1),
        "w2": xavier_normal(k[2], in2, out2),
        "b2": uniform_fan_in(k[3], (out2,), in2),
        "w3": uniform_fan_in(k[4], (in3, out3), in3),
        "b3": uniform_fan_in(k[5], (out3,), in3),
    }


def reference_forward(x1, x2, params):
    x = jnp.concatenate([x1, x2, x1 * x2], axis=1)
    h1 = jax.nn.sigmoid(x @ params["w1"] + params["b1"])
    h2 = jax.nn.relu(h1 @ params["w2"] + params["b2"])
    return h2 @ params["w3"] + params["b3"]


if __name__ == "__main__":
    # Small shapes consistent with the module: x1, x2 : [batch, dim1]
    batch, dim1, dim2, dim3, dim4 = 8, 32, 32, 16, 8

    key = jax.random.PRNGKey(0)
    kx1, kx2, kp, kb = jax.random.split(key, 4)
    x1 = jax.random.normal(kx1, (batch, dim1), jnp.float32)
    x2 = jax.random.normal(kx2, (batch, dim1), jnp.float32)
    params = init_params(kp, dim1, dim3, dim4)

    out = affinity_merge_forward(x1, x2, params)
    out = jax.block_until_ready(out)
    ref = reference_forward(x1, x2, params)
    assert out.shape == (batch, dim4)
    # bf16 MXU matmuls (f32 acc) + bf16 exp / approx reciprocal sigmoid.
    assert jnp.allclose(out, ref, atol=3e-2, rtol=3e-2), "mismatch vs JAX reference"

    # Multi-tile path: B > 32 -> >=2 grid tiles (exercises megacore sharding).
    big_b = 48
    xb1 = jax.random.normal(kb, (big_b, dim1), jnp.float32)
    xb2 = jax.random.normal(jax.random.fold_in(kb, 1), (big_b, dim1), jnp.float32)
    out_b = jax.block_until_ready(affinity_merge_forward(xb1, xb2, params))
    ref_b = reference_forward(xb1, xb2, params)
    assert out_b.shape == (big_b, dim4)
    assert jnp.allclose(out_b, ref_b, atol=3e-2, rtol=3e-2), "mismatch (multi-tile)"

    print("KERNEL_OK")
</pallas_src>

<mosaic_0001>
module attributes {stable_mosaic.version = 11 : i64} {
  func.func @_mlp_kernel(%arg0: i32, %arg1: memref<16x32xf32, #tpu.memory_space<vmem>>, %arg2: memref<16x32xf32, #tpu.memory_space<vmem>>, %arg3: memref<32x128xbf16, #tpu.memory_space<vmem>>, %arg4: memref<32x128xbf16, #tpu.memory_space<vmem>>, %arg5: memref<32x128xbf16, #tpu.memory_space<vmem>>, %arg6: memref<1x128xf32, #tpu.memory_space<vmem>>, %arg7: memref<128x32xbf16, #tpu.memory_space<vmem>>, %arg8: memref<1x32xf32, #tpu.memory_space<vmem>>, %arg9: memref<32x8xbf16, #tpu.memory_space<vmem>>, %arg10: memref<1x8xf32, #tpu.memory_space<vmem>>, %arg11: memref<16x8xf32, #tpu.memory_space<vmem>>) attributes {dimension_semantics = [#tpu.dimension_semantics<parallel>], iteration_bounds = array<i64: 1>, scalar_prefetch = 0 : i64, scratch_operands = 0 : i64, tpu.core_type = #tpu.core_type<tc>, window_params = [{transform_indices = @transform_0, window_bounds = array<i64: 16, 32>}, {transform_indices = @transform_1, window_bounds = array<i64: 16, 32>}, {pipeline_mode = #tpu.pipeline_mode<synchronous>, transform_indices = @transform_2, window_bounds = array<i64: 32, 128>}, {pipeline_mode = #tpu.pipeline_mode<synchronous>, transform_indices = @transform_3, window_bounds = array<i64: 32, 128>}, {pipeline_mode = #tpu.pipeline_mode<synchronous>, transform_indices = @transform_4, window_bounds = array<i64: 32, 128>}, {pipeline_mode = #tpu.pipeline_mode<synchronous>, transform_indices = @transform_5, window_bounds = array<i64: 1, 128>}, {pipeline_mode = #tpu.pipeline_mode<synchronous>, transform_indices = @transform_6, window_bounds = array<i64: 128, 32>}, {pipeline_mode = #tpu.pipeline_mode<synchronous>, transform_indices = @transform_7, window_bounds = array<i64: 1, 32>}, {pipeline_mode = #tpu.pipeline_mode<synchronous>, transform_indices = @transform_8, window_bounds = array<i64: 32, 8>}, {pipeline_mode = #tpu.pipeline_mode<synchronous>, transform_indices = @transform_9, window_bounds = array<i64: 1, 8>}, {transform_indices = @transform_10, window_bounds = array<i64: 16, 8>}]} {
    %c0 = arith.constant 0 : index
    %c0_0 = arith.constant 0 : index
    %0 = vector.load %arg1[%c0, %c0_0] : memref<16x32xf32, #tpu.memory_space<vmem>>, vector<16x32xf32>
    %c0_1 = arith.constant 0 : index
    %c0_2 = arith.constant 0 : index
    %1 = vector.load %arg2[%c0_1, %c0_2] : memref<16x32xf32, #tpu.memory_space<vmem>>, vector<16x32xf32>
    %2 = arith.truncf %0 : vector<16x32xf32> to vector<16x32xbf16>
    %3 = arith.truncf %1 : vector<16x32xf32> to vector<16x32xbf16>
    %4 = arith.mulf %0, %1 : vector<16x32xf32>
    %5 = arith.truncf %4 : vector<16x32xf32> to vector<16x32xbf16>
    %c0_3 = arith.constant 0 : index
    %c0_4 = arith.constant 0 : index
    %6 = vector.load %arg3[%c0_3, %c0_4] : memref<32x128xbf16, #tpu.memory_space<vmem>>, vector<32x128xbf16>
    %cst = arith.constant dense<0.000000e+00> : vector<16x128xf32>
    %7 = tpu.matmul %2, %6, %cst {dimension_numbers = #tpu.dot_dimension_numbers<[1], [0], [0], [1], [0, 0, 1, 1], [], []>} : vector<16x32xbf16>, vector<32x128xbf16>, vector<16x128xf32> -> vector<16x128xf32>
    %c0_5 = arith.constant 0 : index
    %c0_6 = arith.constant 0 : index
    %8 = vector.load %arg4[%c0_5, %c0_6] : memref<32x128xbf16, #tpu.memory_space<vmem>>, vector<32x128xbf16>
    %cst_7 = arith.constant dense<0.000000e+00> : vector<16x128xf32>
    %9 = tpu.matmul %3, %8, %cst_7 {dimension_numbers = #tpu.dot_dimension_numbers<[1], [0], [0], [1], [0, 0, 1, 1], [], []>} : vector<16x32xbf16>, vector<32x128xbf16>, vector<16x128xf32> -> vector<16x128xf32>
    %10 = arith.addf %7, %9 : vector<16x128xf32>
    %c0_8 = arith.constant 0 : index
    %c0_9 = arith.constant 0 : index
    %11 = vector.load %arg5[%c0_8, %c0_9] : memref<32x128xbf16, #tpu.memory_space<vmem>>, vector<32x128xbf16>
    %cst_10 = arith.constant dense<0.000000e+00> : vector<16x128xf32>
    %12 = tpu.matmul %5, %11, %cst_10 {dimension_numbers = #tpu.dot_dimension_numbers<[1], [0], [0], [1], [0, 0, 1, 1], [], []>} : vector<16x32xbf16>, vector<32x128xbf16>, vector<16x128xf32> -> vector<16x128xf32>
    %13 = arith.addf %10, %12 : vector<16x128xf32>
    %c0_11 = arith.constant 0 : index
    %c0_12 = arith.constant 0 : index
    %14 = vector.load %arg6[%c0_11, %c0_12] : memref<1x128xf32, #tpu.memory_space<vmem>>, vector<1x128xf32>
    %15 = vector.broadcast %14 : vector<1x128xf32> to vector<16x128xf32>
    %16 = arith.addf %13, %15 : vector<16x128xf32>
    %cst_13 = arith.constant 0.000000e+00 : f32
    %17 = vector.broadcast %cst_13 : f32 to vector<16x128xf32>
    %18 = arith.subf %17, %16 : vector<16x128xf32>
    %19 = math.exp %18 : vector<16x128xf32>
    %cst_14 = arith.constant 1.000000e+00 : f32
    %20 = vector.broadcast %cst_14 : f32 to vector<16x128xf32>
    %21 = arith.addf %20, %19 : vector<16x128xf32>
    %22 = tpu.reciprocal %21 {approx = true} : vector<16x128xf32> -> vector<16x128xf32>
    %23 = arith.truncf %22 : vector<16x128xf32> to vector<16x128xbf16>
    %c0_15 = arith.constant 0 : index
    %c0_16 = arith.constant 0 : index
    %24 = vector.load %arg7[%c0_15, %c0_16] : memref<128x32xbf16, #tpu.memory_space<vmem>>, vector<128x32xbf16>
    %cst_17 = arith.constant dense<0.000000e+00> : vector<16x32xf32>
    %25 = tpu.matmul %23, %24, %cst_17 {dimension_numbers = #tpu.dot_dimension_numbers<[1], [0], [0], [1], [0, 0, 1, 1], [], []>} : vector<16x128xbf16>, vector<128x32xbf16>, vector<16x32xf32> -> vector<16x32xf32>
    %c0_18 = arith.constant 0 : index
    %c0_19 = arith.constant 0 : index
    %26 = vector.load %arg8[%c0_18, %c0_19] : memref<1x32xf32, #tpu.memory_space<vmem>>, vector<1x32xf32>
    %27 = vector.broadcast %26 : vector<1x32xf32> to vector<16x32xf32>
    %28 = arith.addf %25, %27 : vector<16x32xf32>
    %cst_20 = arith.constant 0.000000e+00 : f32
    %29 = vector.broadcast %cst_20 : f32 to vector<16x32xf32>
    %30 = arith.maximumf %28, %29 : vector<16x32xf32>
    %31 = arith.truncf %30 : vector<16x32xf32> to vector<16x32xbf16>
    %c0_21 = arith.constant 0 : index
    %c0_22 = arith.constant 0 : index
    %32 = vector.load %arg9[%c0_21, %c0_22] : memref<32x8xbf16, #tpu.memory_space<vmem>>, vector<32x8xbf16>
    %cst_23 = arith.constant dense<0.000000e+00> : vector<16x8xf32>
    %33 = tpu.matmul %31, %32, %cst_23 {dimension_numbers = #tpu.dot_dimension_numbers<[1], [0], [0], [1], [0, 0, 1, 1], [], []>} : vector<16x32xbf16>, vector<32x8xbf16>, vector<16x8xf32> -> vector<16x8xf32>
    %c0_24 = arith.constant 0 : index
    %c0_25 = arith.constant 0 : index
    %34 = vector.load %arg10[%c0_24, %c0_25] : memref<1x8xf32, #tpu.memory_space<vmem>>, vector<1x8xf32>
    %35 = vector.broadcast %34 : vector<1x8xf32> to vector<16x8xf32>
    %36 = arith.addf %33, %35 : vector<16x8xf32>
    %c0_26 = arith.constant 0 : index
    %c0_27 = arith.constant 0 : index
    %37 = vector.load %arg11[%c0_26, %c0_27] : memref<16x8xf32, #tpu.memory_space<vmem>>, vector<16x8xf32>
    tpu.vector_store %arg11[%c0_26, %c0_27], %36 {strides = array<i32>} : memref<16x8xf32, #tpu.memory_space<vmem>>, vector<16x8xf32>,
    return
  }
  func.func @transform_0(%arg0: i32) -> (i32, i32) {
    %c0_i32 = arith.constant 0 : i32
    %c0_i32_0 = arith.constant 0 : i32
    return %arg0, %c0_i32 : i32, i32
  }
  func.func @transform_1(%arg0: i32) -> (i32, i32) {
    %c0_i32 = arith.constant 0 : i32
    %c0_i32_0 = arith.constant 0 : i32
    return %arg0, %c0_i32 : i32, i32
  }
  func.func @transform_2(%arg0: i32) -> (i32, i32) {
    %c0_i32 = arith.constant 0 : i32
    %c0_i32_0 = arith.constant 0 : i32
    %c0_i32_1 = arith.constant 0 : i32
    return %c0_i32, %c0_i32_0 : i32, i32
  }
  func.func @transform_3(%arg0: i32) -> (i32, i32) {
    %c0_i32 = arith.constant 0 : i32
    %c0_i32_0 = arith.constant 0 : i32
    %c0_i32_1 = arith.constant 0 : i32
    return %c0_i32, %c0_i32_0 : i32, i32
  }
  func.func @transform_4(%arg0: i32) -> (i32, i32) {
    %c0_i32 = arith.constant 0 : i32
    %c0_i32_0 = arith.constant 0 : i32
    %c0_i32_1 = arith.constant 0 : i32
    return %c0_i32, %c0_i32_0 : i32, i32
  }
  func.func @transform_5(%arg0: i32) -> (i32, i32) {
    %c0_i32 = arith.constant 0 : i32
    %c0_i32_0 = arith.constant 0 : i32
    %c0_i32_1 = arith.constant 0 : i32
    return %c0_i32, %c0_i32_0 : i32, i32
  }
  func.func @transform_6(%arg0: i32) -> (i32, i32) {
    %c0_i32 = arith.constant 0 : i32
    %c0_i32_0 = arith.constant 0 : i32
    %c0_i32_1 = arith.constant 0 : i32
    return %c0_i32, %c0_i32_0 : i32, i32
  }
  func.func @transform_7(%arg0: i32) -> (i32, i32) {
    %c0_i32 = arith.constant 0 : i32
    %c0_i32_0 = arith.constant 0 : i32
    %c0_i32_1 = arith.constant 0 : i32
    return %c0_i32, %c0_i32_0 : i32, i32
  }
  func.func @transform_8(%arg0: i32) -> (i32, i32) {
    %c0_i32 = arith.constant 0 : i32
    %c0_i32_0 = arith.constant 0 : i32
    %c0_i32_1 = arith.constant 0 : i32
    return %c0_i32, %c0_i32_0 : i32, i32
  }
  func.func @transform_9(%arg0: i32) -> (i32, i32) {
    %c0_i32 = arith.constant 0 : i32
    %c0_i32_0 = arith.constant 0 : i32
    %c0_i32_1 = arith.constant 0 : i32
    return %c0_i32, %c0_i32_0 : i32, i32
  }
  func.func @transform_10(%arg0: i32) -> (i32, i32) {
    %c0_i32 = arith.constant 0 : i32
    %c0_i32_0 = arith.constant 0 : i32
    return %arg0, %c0_i32 : i32, i32
  }
}

module attributes {stable_mosaic.version = 11 : i64} {
  func.func @_mlp_kernel(%arg0: i32, %arg1: memref<16x32xf32, #tpu.memory_space<vmem>>, %arg2: memref<16x32xf32, #tpu.memory_space<vmem>>, %arg3: memref<32x128xbf16, #tpu.memory_space<vmem>>, %arg4: memref<32x128xbf16, #tpu.memory_space<vmem>>, %arg5: memref<32x128xbf16, #tpu.memory_space<vmem>>, %arg6: memref<1x128xf32, #tpu.memory_space<vmem>>, %arg7: memref<128x32xbf16, #tpu.memory_space<vmem>>, %arg8: memref<1x32xf32, #tpu.memory_space<vmem>>, %arg9: memref<32x8xbf16, #tpu.memory_space<vmem>>, %arg10: memref<1x8xf32, #tpu.memory_space<vmem>>, %arg11: memref<16x8xf32, #tpu.memory_space<vmem>>) attributes {dimension_semantics = [#tpu.dimension_semantics<parallel>], iteration_bounds = array<i64: 1>, scalar_prefetch = 0 : i64, scratch_operands = 0 : i64, tpu.core_type = #tpu.core_type<tc>, window_params = [{transform_indices = @transform_0, window_bounds = array<i64: 16, 32>}, {transform_indices = @transform_1, window_bounds = array<i64: 16, 32>}, {pipeline_mode = #tpu.pipeline_mode<synchronous>, transform_indices = @transform_2, window_bounds = array<i64: 32, 128>}, {pipeline_mode = #tpu.pipeline_mode<synchronous>, transform_indices = @transform_3, window_bounds = array<i64: 32, 128>}, {pipeline_mode = #tpu.pipeline_mode<synchronous>, transform_indices = @transform_4, window_bounds = array<i64: 32, 128>}, {pipeline_mode = #tpu.pipeline_mode<synchronous>, transform_indices = @transform_5, window_bounds = array<i64: 1, 128>}, {pipeline_mode = #tpu.pipeline_mode<synchronous>, transform_indices = @transform_6, window_bounds = array<i64: 128, 32>}, {pipeline_mode = #tpu.pipeline_mode<synchronous>, transform_indices = @transform_7, window_bounds = array<i64: 1, 32>}, {pipeline_mode = #tpu.pipeline_mode<synchronous>, transform_indices = @transform_8, window_bounds = array<i64: 32, 8>}, {pipeline_mode = #tpu.pipeline_mode<synchronous>, transform_indices = @transform_9, window_bounds = array<i64: 1, 8>}, {transform_indices = @transform_10, window_bounds = array<i64: 16, 8>}]} {
    %c0 = arith.constant 0 : index
    %c0_0 = arith.constant 0 : index
    %0 = vector.load %arg1[%c0, %c0_0] : memref<16x32xf32, #tpu.memory_space<vmem>>, vector<16x32xf32>
    %c0_1 = arith.constant 0 : index
    %c0_2 = arith.constant 0 : index
    %1 = vector.load %arg2[%c0_1, %c0_2] : memref<16x32xf32, #tpu.memory_space<vmem>>, vector<16x32xf32>
    %2 = arith.truncf %0 : vector<16x32xf32> to vector<16x32xbf16>
    %3 = arith.truncf %1 : vector<16x32xf32> to vector<16x32xbf16>
    %4 = arith.mulf %0, %1 : vector<16x32xf32>
    %5 = arith.truncf %4 : vector<16x32xf32> to vector<16x32xbf16>
    %c0_3 = arith.constant 0 : index
    %c0_4 = arith.constant 0 : index
    %6 = vector.load %arg3[%c0_3, %c0_4] : memref<32x128xbf16, #tpu.memory_space<vmem>>, vector<32x128xbf16>
    %cst = arith.constant dense<0.000000e+00> : vector<16x128xf32>
    %7 = tpu.matmul %2, %6, %cst {dimension_numbers = #tpu.dot_dimension_numbers<[1], [0], [0], [1], [0, 0, 1, 1], [], []>} : vector<16x32xbf16>, vector<32x128xbf16>, vector<16x128xf32> -> vector<16x128xf32>
    %c0_5 = arith.constant 0 : index
    %c0_6 = arith.constant 0 : index
    %8 = vector.load %arg4[%c0_5, %c0_6] : memref<32x128xbf16, #tpu.memory_space<vmem>>, vector<32x128xbf16>
    %cst_7 = arith.constant dense<0.000000e+00> : vector<16x128xf32>
    %9 = tpu.matmul %3, %8, %cst_7 {dimension_numbers = #tpu.dot_dimension_numbers<[1], [0], [0], [1], [0, 0, 1, 1], [], []>} : vector<16x32xbf16>, vector<32x128xbf16>, vector<16x128xf32> -> vector<16x128xf32>
    %10 = arith.addf %7, %9 : vector<16x128xf32>
    %c0_8 = arith.constant 0 : index
    %c0_9 = arith.constant 0 : index
    %11 = vector.load %arg5[%c0_8, %c0_9] : memref<32x128xbf16, #tpu.memory_space<vmem>>, vector<32x128xbf16>
    %cst_10 = arith.constant dense<0.000000e+00> : vector<16x128xf32>
    %12 = tpu.matmul %5, %11, %cst_10 {dimension_numbers = #tpu.dot_dimension_numbers<[1], [0], [0], [1], [0, 0, 1, 1], [], []>} : vector<16x32xbf16>, vector<32x128xbf16>, vector<16x128xf32> -> vector<16x128xf32>
    %13 = arith.addf %10, %12 : vector<16x128xf32>
    %c0_11 = arith.constant 0 : index
    %c0_12 = arith.constant 0 : index
    %14 = vector.load %arg6[%c0_11, %c0_12] : memref<1x128xf32, #tpu.memory_space<vmem>>, vector<1x128xf32>
    %15 = vector.broadcast %14 : vector<1x128xf32> to vector<16x128xf32>
    %16 = arith.addf %13, %15 : vector<16x128xf32>
    %cst_13 = arith.constant 0.000000e+00 : f32
    %17 = vector.broadcast %cst_13 : f32 to vector<16x128xf32>
    %18 = arith.subf %17, %16 : vector<16x128xf32>
    %19 = math.exp %18 : vector<16x128xf32>
    %cst_14 = arith.constant 1.000000e+00 : f32
    %20 = vector.broadcast %cst_14 : f32 to vector<16x128xf32>
    %21 = arith.addf %20, %19 : vector<16x128xf32>
    %22 = tpu.reciprocal %21 {approx = true} : vector<16x128xf32> -> vector<16x128xf32>
    %23 = arith.truncf %22 : vector<16x128xf32> to vector<16x128xbf16>
    %c0_15 = arith.constant 0 : index
    %c0_16 = arith.constant 0 : index
    %24 = vector.load %arg7[%c0_15, %c0_16] : memref<128x32xbf16, #tpu.memory_space<vmem>>, vector<128x32xbf16>
    %cst_17 = arith.constant dense<0.000000e+00> : vector<16x32xf32>
    %25 = tpu.matmul %23, %24, %cst_17 {dimension_numbers = #tpu.dot_dimension_numbers<[1], [0], [0], [1], [0, 0, 1, 1], [], []>} : vector<16x128xbf16>, vector<128x32xbf16>, vector<16x32xf32> -> vector<16x32xf32>
    %c0_18 = arith.constant 0 : index
    %c0_19 = arith.constant 0 : index
    %26 = vector.load %arg8[%c0_18, %c0_19] : memref<1x32xf32, #tpu.memory_space<vmem>>, vector<1x32xf32>
    %27 = vector.broadcast %26 : vector<1x32xf32> to vector<16x32xf32>
    %28 = arith.addf %25, %27 : vector<16x32xf32>
    %cst_20 = arith.constant 0.000000e+00 : f32
    %29 = vector.broadcast %cst_20 : f32 to vector<16x32xf32>
    %30 = arith.maximumf %28, %29 : vector<16x32xf32>
    %31 = arith.truncf %30 : vector<16x32xf32> to vector<16x32xbf16>
    %c0_21 = arith.constant 0 : index
    %c0_22 = arith.constant 0 : index
    %32 = vector.load %arg9[%c0_21, %c0_22] : memref<32x8xbf16, #tpu.memory_space<vmem>>, vector<32x8xbf16>
    %cst_23 = arith.constant dense<0.000000e+00> : vector<16x8xf32>
    %33 = tpu.matmul %31, %32, %cst_23 {dimension_numbers = #tpu.dot_dimension_numbers<[1], [0], [0], [1], [0, 0, 1, 1], [], []>} : vector<16x32xbf16>, vector<32x8xbf16>, vector<16x8xf32> -> vector<16x8xf32>
    %c0_24 = arith.constant 0 : index
    %c0_25 = arith.constant 0 : index
    %34 = vector.load %arg10[%c0_24, %c0_25] : memref<1x8xf32, #tpu.memory_space<vmem>>, vector<1x8xf32>
    %35 = vector.broadcast %34 : vector<1x8xf32> to vector<16x8xf32>
    %36 = arith.addf %33, %35 : vector<16x8xf32>
    %c0_26 = arith.constant 0 : index
    %c0_27 = arith.constant 0 : index
    %37 = vector.load %arg11[%c0_26, %c0_27] : memref<16x8xf32, #tpu.memory_space<vmem>>, vector<16x8xf32>
    tpu.vector_store %arg11[%c0_26, %c0_27], %36 {strides = array<i32>} : memref<16x8xf32, #tpu.memory_space<vmem>>, vector<16x8xf32>,
    return
  }
  func.func @transform_0(%arg0: i32) -> (i32, i32) {
    %c0_i32 = arith.constant 0 : i32
    %c0_i32_0 = arith.constant 0 : i32
    return %arg0, %c0_i32 : i32, i32
  }
  func.func @transform_1(%arg0: i32) -> (i32, i32) {
    %c0_i32 = arith.constant 0 : i32
    %c0_i32_0 = arith.constant 0 : i32
    return %arg0, %c0_i32 : i32, i32
  }
  func.func @transform_2(%arg0: i32) -> (i32, i32) {
    %c0_i32 = arith.constant 0 : i32
    %c0_i32_0 = arith.constant 0 : i32
    %c0_i32_1 = arith.constant 0 : i32
    return %c0_i32, %c0_i32_0 : i32, i32
  }
  func.func @transform_3(%arg0: i32) -> (i32, i32) {
    %c0_i32 = arith.constant 0 : i32
    %c0_i32_0 = arith.constant 0 : i32
    %c0_i32_1 = arith.constant 0 : i32
    return %c0_i32, %c0_i32_0 : i32, i32
  }
  func.func @transform_4(%arg0: i32) -> (i32, i32) {
    %c0_i32 = arith.constant 0 : i32
    %c0_i32_0 = arith.constant 0 : i32
    %c0_i32_1 = arith.constant 0 : i32
    return %c0_i32, %c0_i32_0 : i32, i32
  }
  func.func @transform_5(%arg0: i32) -> (i32, i32) {
    %c0_i32 = arith.constant 0 : i32
    %c0_i32_0 = arith.constant 0 : i32
    %c0_i32_1 = arith.constant 0 : i32
    return %c0_i32, %c0_i32_0 : i32, i32
  }
  func.func @transform_6(%arg0: i32) -> (i32, i32) {
    %c0_i32 = arith.constant 0 : i32
    %c0_i32_0 = arith.constant 0 : i32
    %c0_i32_1 = arith.constant 0 : i32
    return %c0_i32, %c0_i32_0 : i32, i32
  }
  func.func @transform_7(%arg0: i32) -> (i32, i32) {
    %c0_i32 = arith.constant 0 : i32
    %c0_i32_0 = arith.constant 0 : i32
    %c0_i32_1 = arith.constant 0 : i32
    return %c0_i32, %c0_i32_0 : i32, i32
  }
  func.func @transform_8(%arg0: i32) -> (i32, i32) {
    %c0_i32 = arith.constant 0 : i32
    %c0_i32_0 = arith.constant 0 : i32
    %c0_i32_1 = arith.constant 0 : i32
    return %c0_i32, %c0_i32_0 : i32, i32
  }
  func.func @transform_9(%arg0: i32) -> (i32, i32) {
    %c0_i32 = arith.constant 0 : i32
    %c0_i32_0 = arith.constant 0 : i32
    %c0_i32_1 = arith.constant 0 : i32
    return %c0_i32, %c0_i32_0 : i32, i32
  }
  func.func @transform_10(%arg0: i32) -> (i32, i32) {
    %c0_i32 = arith.constant 0 : i32
    %c0_i32_0 = arith.constant 0 : i32
    return %arg0, %c0_i32 : i32, i32
  }
}

</mosaic_0001>

<llo_original>
// kernel: tpu_custom_call.1
$region0: #{tpu_custom_call.1}
  #allocation0 [shape = 'u32[]', space=smem, size = 0x4, offset = 0x4, fixed_abs, tag = 'smem constant byte address 0x4 - core index']
  #allocation1 [shape = 'u32[144,128]{1,0:T(1,128)}', space=vmem, size = 0x12000, scoped, tag = 'internal scratch']
  %s0 = inlined_call_operand.vmem [shape: f32[16,32], index: 0, kind: input, shape index: {}]
  %s1 = inlined_call_operand.vmem [shape: f32[16,32], index: 1, kind: input, shape index: {}]
  %s2 = inlined_call_operand.vmem [shape: bf16[32,128], index: 2, kind: input, shape index: {}]
  %s3 = inlined_call_operand.vmem [shape: bf16[32,128], index: 3, kind: input, shape index: {}]
  %s4 = inlined_call_operand.vmem [shape: bf16[32,128], index: 4, kind: input, shape index: {}]
  %s5 = inlined_call_operand.vmem [shape: f32[1,128], index: 5, kind: input, shape index: {}]
  %s6 = inlined_call_operand.vmem [shape: bf16[128,32], index: 6, kind: input, shape index: {}]
  %s7 = inlined_call_operand.vmem [shape: f32[1,32], index: 7, kind: input, shape index: {}]
  %s8 = inlined_call_operand.vmem [shape: bf16[32,8], index: 8, kind: input, shape index: {}]
  %s9 = inlined_call_operand.vmem [shape: f32[1,8], index: 9, kind: input, shape index: {}]
  %s10 = inlined_call_operand.vmem [shape: f32[16,8], index: 10, kind: output, shape index: {}]
  %s11 = sld [smem:[#allocation0]]
  $region50: #{tpu_custom_call.1} parent=0
    _
  %s13 = ssub.s32 1, %s11
  %s14 = scalar_select 0, %s13, %s11
  // Predicated region
  $region2: #{tpu_custom_call.1} parent=0 // pred_check
    _
  $region3: #{tpu_custom_call.1} parent=0 // pred_check_branch
    %16 = sbr.rel (0) target = $region5
  $region4: #{tpu_custom_call.1} parent=0 // pred_region
    _
  $region5: #{tpu_custom_call.1} parent=0 // pred_fallthru
    _
  // Predicated region
  $region6: #{tpu_custom_call.1} parent=0 // pred_check
    _
  $region7: #{tpu_custom_call.1} parent=0 // pred_check_branch
    %18 = sbr.rel (0) target = $region9
  $region8: #{tpu_custom_call.1} parent=0 // pred_region
    _
  $region9: #{tpu_custom_call.1} parent=0 // pred_fallthru
    _
  // Predicated region
  $region10: #{tpu_custom_call.1} parent=0 // pred_check
    _
  $region11: #{tpu_custom_call.1} parent=0 // pred_check_branch
    %20 = sbr.rel (0) target = $region13
  $region12: #{tpu_custom_call.1} parent=0 // pred_region
    _
  $region13: #{tpu_custom_call.1} parent=0 // pred_fallthru
    _
  // Predicated region
  $region14: #{tpu_custom_call.1} parent=0 // pred_check
    _
  $region15: #{tpu_custom_call.1} parent=0 // pred_check_branch
    %22 = sbr.rel (0) target = $region17
  $region16: #{tpu_custom_call.1} parent=0 // pred_region
    _
  $region17: #{tpu_custom_call.1} parent=0 // pred_fallthru
    _
  // Predicated region
  $region18: #{tpu_custom_call.1} parent=0 // pred_check
    _
  $region19: #{tpu_custom_call.1} parent=0 // pred_check_branch
    %24 = sbr.rel (0) target = $region21
  $region20: #{tpu_custom_call.1} parent=0 // pred_region
    _
  $region21: #{tpu_custom_call.1} parent=0 // pred_fallthru
    _
  // Predicated region
  $region22: #{tpu_custom_call.1} parent=0 // pred_check
    _
  $region23: #{tpu_custom_call.1} parent=0 // pred_check_branch
    %26 = sbr.rel (0) target = $region25
  $region24: #{tpu_custom_call.1} parent=0 // pred_region
    _
  $region25: #{tpu_custom_call.1} parent=0 // pred_fallthru
    _
  // Predicated region
  $region26: #{tpu_custom_call.1} parent=0 // pred_check
    _
  $region27: #{tpu_custom_call.1} parent=0 // pred_check_branch
    %28 = sbr.rel (0) target = $region29
  $region28: #{tpu_custom_call.1} parent=0 // pred_region
    _
  $region29: #{tpu_custom_call.1} parent=0 // pred_fallthru
    _
  // Predicated region
  $region30: #{tpu_custom_call.1} parent=0 // pred_check
    _
  $region31: #{tpu_custom_call.1} parent=0 // pred_check_branch
    %30 = sbr.rel (0) target = $region33
  $region32: #{tpu_custom_call.1} parent=0 // pred_region
    _
  $region33: #{tpu_custom_call.1} parent=0 // pred_fallthru
    _
  // Predicated region
  $region34: #{tpu_custom_call.1} parent=0 // pred_check
    _
  $region35: #{tpu_custom_call.1} parent=0 // pred_check_branch
    %32 = sbr.rel (0) target = $region37
  $region36: #{tpu_custom_call.1} parent=0 // pred_region
    _
  $region37: #{tpu_custom_call.1} parent=0 // pred_fallthru
    _
  // Predicated region
  $region38: #{tpu_custom_call.1} parent=0 // pred_check
    _
  $region39: #{tpu_custom_call.1} parent=0 // pred_check_branch
    %34 = sbr.rel (0) target = $region41
  $region40: #{tpu_custom_call.1} parent=0 // pred_region
    _
  $region41: #{tpu_custom_call.1} parent=0 // pred_fallthru
    _
  %v36 = vld [vmem:[%s0] sm:$0xff]
  %v37 = vld [vmem:[%s0 + $0x8] sm:$0xff]
  %v38 = vld [vmem:[%s1] sm:$0xff]
  %v39 = vld [vmem:[%s1 + $0x8] sm:$0xff]
  %v40 = vpack.c.bf16 %v37, %v36
  %v41 = vpack.c.bf16 %v39, %v38
  %v42 = vmul.f32 %v36, %v38
  %v43 = vmul.f32 %v37, %v39
  %v44 = vpack.c.bf16 %v43, %v42
  %v45 = vld [vmem:[%s2] sm:$0xf]
  %v46 = vld [vmem:[%s2 + $0x4] sm:$0xf]
  %v47 = vld [vmem:[%s2 + $0x8] sm:$0xf]
  %v48 = vld [vmem:[%s2 + $0xc] sm:$0xf]
  %v49 = vld [vmem:[%s3] sm:$0xf]
  %v50 = vld [vmem:[%s3 + $0x4] sm:$0xf]
  %v51 = vld [vmem:[%s3 + $0x8] sm:$0xf]
  %v52 = vld [vmem:[%s3 + $0xc] sm:$0xf]
  %v57 = vunpack.c.l.b16 %v49
  %v58 = vunpack.c.l.b16 %v50
  %v59 = vunpack.c.l.b16 %v51
  %v60 = vunpack.c.l.b16 %v52
  %v61 = vpack.c.b16 %v58, %v57
  %v62 = vpack.c.b16 %v60, %v59
  %vm65 = vcmask 261120
  %v67 = vsel %vm65, %v41, 0
  %69 = vmatprep.subr.bf16.mxu0 0
  %70 = vmatpush1.bf16.msra.mxu0 0
  %71 = vmatprep.subr.bf16.mxu0 0
  %72 = vmatpush1.bf16.msra.mxu0 0
  %73 = vmatprep.subr.bf16.mxu0 0
  %74 = vmatpush1.bf16.msra.mxu0 0
  %75 = vmatprep.subr.bf16.mxu0 0
  %76 = vmatpush1.bf16.msra.mxu0 0
  %77 = vmatprep.subr.bf16.mxu0 0
  %78 = vmatpush1.bf16.msra.mxu0 0
  %79 = vmatprep.subr.bf16.mxu0 0
  %80 = vmatpush1.bf16.msra.mxu0 0
  %81 = vmatprep.subr.bf16.mxu0 0
  %82 = vmatpush1.bf16.msra.mxu0 %v62
  %83 = vmatprep.subr.bf16.mxu0 0
  %84 = vmatpush1.bf16.msra.mxu0 %v61
  %85 = vmatprep.subr.bf16.mxu0 0
  %86 = vmatpush2.bf16.msra.mxu0 0
  %87 = vmatprep.subr.bf16.mxu0 0
  %88 = vmatpush2.bf16.msra.mxu0 0
  %89 = vmatprep.subr.bf16.mxu0 0
  %90 = vmatpush2.bf16.msra.mxu0 0
  %91 = vmatprep.subr.bf16.mxu0 0
  %92 = vmatpush2.bf16.msra.mxu0 0
  %93 = vmatprep.subr.bf16.mxu0 0
  %94 = vmatpush2.bf16.msra.mxu0 0
  %95 = vmatprep.subr.bf16.mxu0 0
  %96 = vmatpush2.bf16.msra.mxu0 0
  %97 = vmatprep.subr.bf16.mxu0 0
  %98 = vmatpush2.bf16.msra.mxu0 0
  %99 = vmatprep.subr.bf16.mxu0 0
  %100 = vmatpush2.bf16.msra.mxu0 0
  %101 = vmatprep.mubr.bf16.mxu0 0
  %102 = vmatmul.mubr.bf16.gmra.mxu0 %v67
  %v103 = vpop.f32.mrf.mxu0
  %v104 = vadd.f32 0.0, %v103
  %v105 = vpop.f32.mrf.mxu0
  %v106 = vpop.f32.mrf.mxu0
  %v107 = vadd.f32 0.0, %v106
  %v108 = vpop.f32.mrf.mxu0
  %109 = vdwg.mxu0
  %v114 = vunpack.c.l.b16 %v45
  %v115 = vunpack.c.l.b16 %v46
  %v116 = vunpack.c.l.b16 %v47
  %v117 = vunpack.c.l.b16 %v48
  %v118 = vpack.c.b16 %v115, %v114
  %v119 = vpack.c.b16 %v117, %v116
  %v123 = vsel %vm65, %v40, 0
  %125 = vmatprep.subr.bf16.mxu0 0
  %126 = vmatpush1.bf16.msra.mxu0 0
  %127 = vmatprep.subr.bf16.mxu0 0
  %128 = vmatpush1.bf16.msra.mxu0 0
  %129 = vmatprep.subr.bf16.mxu0 0
  %130 = vmatpush1.bf16.msra.mxu0 0
  %131 = vmatprep.subr.bf16.mxu0 0
  %132 = vmatpush1.bf16.msra.mxu0 0
  %133 = vmatprep.subr.bf16.mxu0 0
  %134 = vmatpush1.bf16.msra.mxu0 0
  %135 = vmatprep.subr.bf16.mxu0 0
  %136 = vmatpush1.bf16.msra.mxu0 0
  %137 = vmatprep.subr.bf16.mxu0 0
  %138 = vmatpush1.bf16.msra.mxu0 %v119
  %139 = vmatprep.subr.bf16.mxu0 0
  %140 = vmatpush1.bf16.msra.mxu0 %v118
  %141 = vmatprep.subr.bf16.mxu0 0
  %142 = vmatpush2.bf16.msra.mxu0 0
  %143 = vmatprep.subr.bf16.mxu0 0
  %144 = vmatpush2.bf16.msra.mxu0 0
  %145 = vmatprep.subr.bf16.mxu0 0
  %146 = vmatpush2.bf16.msra.mxu0 0
  %147 = vmatprep.subr.bf16.mxu0 0
  %148 = vmatpush2.bf16.msra.mxu0 0
  %149 = vmatprep.subr.bf16.mxu0 0
  %150 = vmatpush2.bf16.msra.mxu0 0
  %151 = vmatprep.subr.bf16.mxu0 0
  %152 = vmatpush2.bf16.msra.mxu0 0
  %153 = vmatprep.subr.bf16.mxu0 0
  %154 = vmatpush2.bf16.msra.mxu0 0
  %155 = vmatprep.subr.bf16.mxu0 0
  %156 = vmatpush2.bf16.msra.mxu0 0
  %157 = vmatprep.mubr.bf16.mxu0 0
  %158 = vmatmul.mubr.bf16.gmra.mxu0 %v123
  %v159 = vpop.f32.mrf.mxu0
  %v160 = vadd.f32 %v104, %v159
  %v161 = vpop.f32.mrf.mxu0
  %v162 = vpop.f32.mrf.mxu0
  %v163 = vadd.f32 %v107, %v162
  %v164 = vpop.f32.mrf.mxu0
  %165 = vdwg.mxu0
  %v166 = vld [vmem:[%s4] sm:$0xf]
  %v167 = vld [vmem:[%s4 + $0x4] sm:$0xf]
  %v168 = vld [vmem:[%s4 + $0x8] sm:$0xf]
  %v169 = vld [vmem:[%s4 + $0xc] sm:$0xf]
  %v174 = vunpack.c.l.b16 %v166
  %v175 = vunpack.c.l.b16 %v167
  %v176 = vunpack.c.l.b16 %v168
  %v177 = vunpack.c.l.b16 %v169
  %v178 = vpack.c.b16 %v175, %v174
  %v179 = vpack.c.b16 %v177, %v176
  %v183 = vsel %vm65, %v44, 0
  %185 = vmatprep.subr.bf16.mxu0 0
  %186 = vmatpush1.bf16.msra.mxu0 0
  %187 = vmatprep.subr.bf16.mxu0 0
  %188 = vmatpush1.bf16.msra.mxu0 0
  %189 = vmatprep.subr.bf16.mxu0 0
  %190 = vmatpush1.bf16.msra.mxu0 0
  %191 = vmatprep.subr.bf16.mxu0 0
  %192 = vmatpush1.bf16.msra.mxu0 0
  %193 = vmatprep.subr.bf16.mxu0 0
  %194 = vmatpush1.bf16.msra.mxu0 0
  %195 = vmatprep.subr.bf16.mxu0 0
  %196 = vmatpush1.bf16.msra.mxu0 0
  %197 = vmatprep.subr.bf16.mxu0 0
  %198 = vmatpush1.bf16.msra.mxu0 %v179
  %199 = vmatprep.subr.bf16.mxu0 0
  %200 = vmatpush1.bf16.msra.mxu0 %v178
  %201 = vmatprep.subr.bf16.mxu0 0
  %202 = vmatpush2.bf16.msra.mxu0 0
  %203 = vmatprep.subr.bf16.mxu0 0
  %204 = vmatpush2.bf16.msra.mxu0 0
  %205 = vmatprep.subr.bf16.mxu0 0
  %206 = vmatpush2.bf16.msra.mxu0 0
  %207 = vmatprep.subr.bf16.mxu0 0
  %208 = vmatpush2.bf16.msra.mxu0 0
  %209 = vmatprep.subr.bf16.mxu0 0
  %210 = vmatpush2.bf16.msra.mxu0 0
  %211 = vmatprep.subr.bf16.mxu0 0
  %212 = vmatpush2.bf16.msra.mxu0 0
  %213 = vmatprep.subr.bf16.mxu0 0
  %214 = vmatpush2.bf16.msra.mxu0 0
  %215 = vmatprep.subr.bf16.mxu0 0
  %216 = vmatpush2.bf16.msra.mxu0 0
  %217 = vmatprep.mubr.bf16.mxu0 0
  %218 = vmatmul.mubr.bf16.gmra.mxu0 %v183
  %v219 = vpop.f32.mrf.mxu0
  %v220 = vadd.f32 0.0, %v219
  %v221 = vpop.f32.mrf.mxu0
  %v222 = vpop.f32.mrf.mxu0
  %v223 = vadd.f32 0.0, %v222
  %v224 = vpop.f32.mrf.mxu0
  %225 = vdwg.mxu0
  %v226 = vadd.f32 %v160, %v220
  %v227 = vadd.f32 %v163, %v223
  %v228 = vld [vmem:[%s5] sm:$0x1]
  %v230 = vlaneseq
  %v231 = vshrl.u32 %v230, 7
  %v232 = vsub.s32 0, %v231
  %v233 = vrot.slane %v228, %v232
  %v235 = vadd.f32 %v226, %v233
  %v236 = vadd.f32 %v227, %v233
  %v237 = vsub.f32 0.0, %v235
  %v238 = vsub.f32 0.0, %v236
  %v239 = vmul.f32 %v237, 1.442695
  %v240 = vpow.pop %v239
  %v241 = vmul.f32 %v238, 1.442695
  %v242 = vpow.pop %v241
  %v243 = vadd.f32 %v240, 1.0
  %v244 = vadd.f32 %v242, 1.0
  %v245 = vrcp.pop %v243
  %v246 = vrcp.pop %v244
  %v247 = vpack.c.bf16 %v246, %v245
  %v248 = vld [vmem:[%s6] sm:$0xf]
  %v249 = vld [vmem:[%s6 + $0x4] sm:$0xf]
  %v250 = vld [vmem:[%s6 + $0x8] sm:$0xf]
  %v251 = vld [vmem:[%s6 + $0xc] sm:$0xf]
  %v252 = vld [vmem:[%s6 + $0x10] sm:$0xf]
  %v253 = vld [vmem:[%s6 + $0x14] sm:$0xf]
  %v254 = vld [vmem:[%s6 + $0x18] sm:$0xf]
  %v255 = vld [vmem:[%s6 + $0x1c] sm:$0xf]
  %v256 = vld [vmem:[%s6 + $0x20] sm:$0xf]
  %v257 = vld [vmem:[%s6 + $0x24] sm:$0xf]
  %v258 = vld [vmem:[%s6 + $0x28] sm:$0xf]
  %v259 = vld [vmem:[%s6 + $0x2c] sm:$0xf]
  %v260 = vld [vmem:[%s6 + $0x30] sm:$0xf]
  %v261 = vld [vmem:[%s6 + $0x34] sm:$0xf]
  %v262 = vld [vmem:[%s6 + $0x38] sm:$0xf]
  %v263 = vld [vmem:[%s6 + $0x3c] sm:$0xf]
  %v264 = vld [vmem:[%s7] sm:$0x1]
  %v266 = vlaneseq
  %v267 = vshrl.u32 %v266, 7
  %v268 = vsub.s32 0, %v267
  %v269 = vrot.slane %v264, %v268
  %v287 = vunpack.c.l.b16 %v248
  %v288 = vunpack.c.l.b16 %v249
  %v289 = vunpack.c.l.b16 %v250
  %v290 = vunpack.c.l.b16 %v251
  %v291 = vunpack.c.l.b16 %v252
  %v292 = vunpack.c.l.b16 %v253
  %v293 = vunpack.c.l.b16 %v254
  %v294 = vunpack.c.l.b16 %v255
  %v295 = vunpack.c.l.b16 %v256
  %v296 = vunpack.c.l.b16 %v257
  %v297 = vunpack.c.l.b16 %v258
  %v298 = vunpack.c.l.b16 %v259
  %v299 = vunpack.c.l.b16 %v260
  %v300 = vunpack.c.l.b16 %v261
  %v301 = vunpack.c.l.b16 %v262
  %v302 = vunpack.c.l.b16 %v263
  %v303 = vpack.c.b16 %v288, %v287
  %v304 = vpack.c.b16 %v290, %v289
  %v305 = vpack.c.b16 %v292, %v291
  %v306 = vpack.c.b16 %v294, %v293
  %v307 = vpack.c.b16 %v296, %v295
  %v308 = vpack.c.b16 %v298, %v297
  %v309 = vpack.c.b16 %v300, %v299
  %v310 = vpack.c.b16 %v302, %v301
  %319 = vmatprep.subr.bf16.mxu0 0
  %320 = vmatpush1.bf16.msra.mxu0 %v310
  %321 = vmatprep.subr.bf16.mxu0 0
  %322 = vmatpush1.bf16.msra.mxu0 %v309
  %323 = vmatprep.subr.bf16.mxu0 0
  %324 = vmatpush1.bf16.msra.mxu0 %v308
  %325 = vmatprep.subr.bf16.mxu0 0
  %326 = vmatpush1.bf16.msra.mxu0 %v307
  %327 = vmatprep.subr.bf16.mxu0 0
  %328 = vmatpush1.bf16.msra.mxu0 %v306
  %329 = vmatprep.subr.bf16.mxu0 0
  %330 = vmatpush1.bf16.msra.mxu0 %v305
  %331 = vmatprep.subr.bf16.mxu0 0
  %332 = vmatpush1.bf16.msra.mxu0 %v304
  %333 = vmatprep.subr.bf16.mxu0 0
  %334 = vmatpush1.bf16.msra.mxu0 %v303
  %335 = vmatprep.subr.bf16.mxu0 0
  %336 = vmatpush2.bf16.msra.mxu0 0
  %337 = vmatprep.subr.bf16.mxu0 0
  %338 = vmatpush2.bf16.msra.mxu0 0
  %339 = vmatprep.subr.bf16.mxu0 0
  %340 = vmatpush2.bf16.msra.mxu0 0
  %341 = vmatprep.subr.bf16.mxu0 0
  %342 = vmatpush2.bf16.msra.mxu0 0
  %343 = vmatprep.subr.bf16.mxu0 0
  %344 = vmatpush2.bf16.msra.mxu0 0
  %345 = vmatprep.subr.bf16.mxu0 0
  %346 = vmatpush2.bf16.msra.mxu0 0
  %347 = vmatprep.subr.bf16.mxu0 0
  %348 = vmatpush2.bf16.msra.mxu0 0
  %349 = vmatprep.subr.bf16.mxu0 0
  %350 = vmatpush2.bf16.msra.mxu0 0
  %351 = vmatprep.mubr.bf16.mxu0 0
  %352 = vmatmul.mubr.bf16.gmra.mxu0 %v247
  %v353 = vpop.f32.mrf.mxu0
  %v354 = vadd.f32 %v269, %v353
  %v355 = vpop.f32.mrf.mxu0
  %v356 = vpop.f32.mrf.mxu0
  %v357 = vadd.f32 %v269, %v356
  %v358 = vpop.f32.mrf.mxu0
  %359 = vdwg.mxu0
  %v360 = vmax.f32 %v354, 0.0
  %v361 = vmax.f32 %v357, 0.0
  %v362 = vpack.c.bf16 %v361, %v360
  %v363 = vld [vmem:[%s8] sm:$0xf]
  %v364 = vld [vmem:[%s8 + $0x4] sm:$0xf]
  %v365 = vld [vmem:[%s8 + $0x8] sm:$0xf]
  %v366 = vld [vmem:[%s8 + $0xc] sm:$0xf]
  %v367 = vld [vmem:[%s9] sm:$0x1]
  %v369 = vlaneseq
  %v370 = vshrl.u32 %v369, 7
  %v371 = vsub.s32 0, %v370
  %v372 = vrot.slane %v367, %v371
  %v378 = vunpack.c.l.b16 %v363
  %v379 = vunpack.c.l.b16 %v364
  %v380 = vunpack.c.l.b16 %v365
  %v381 = vunpack.c.l.b16 %v366
  %v382 = vpack.c.b16 %v379, %v378
  %v383 = vpack.c.b16 %v381, %v380
  %v387 = vsel %vm65, %v362, 0
  %389 = vmatprep.subr.bf16.mxu0 0
  %390 = vmatpush1.bf16.msra.mxu0 0
  %391 = vmatprep.subr.bf16.mxu0 0
  %392 = vmatpush1.bf16.msra.mxu0 0
  %393 = vmatprep.subr.bf16.mxu0 0
  %394 = vmatpush1.bf16.msra.mxu0 0
  %395 = vmatprep.subr.bf16.mxu0 0
  %396 = vmatpush1.bf16.msra.mxu0 0
  %397 = vmatprep.subr.bf16.mxu0 0
  %398 = vmatpush1.bf16.msra.mxu0 0
  %399 = vmatprep.subr.bf16.mxu0 0
  %400 = vmatpush1.bf16.msra.mxu0 0
  %401 = vmatprep.subr.bf16.mxu0 0
  %402 = vmatpush1.bf16.msra.mxu0 %v383
  %403 = vmatprep.subr.bf16.mxu0 0
  %404 = vmatpush1.bf16.msra.mxu0 %v382
  %405 = vmatprep.subr.bf16.mxu0 0
  %406 = vmatpush2.bf16.msra.mxu0 0
  %407 = vmatprep.subr.bf16.mxu0 0
  %408 = vmatpush2.bf16.msra.mxu0 0
  %409 = vmatprep.subr.bf16.mxu0 0
  %410 = vmatpush2.bf16.msra.mxu0 0
  %411 = vmatprep.subr.bf16.mxu0 0
  %412 = vmatpush2.bf16.msra.mxu0 0
  %413 = vmatprep.subr.bf16.mxu0 0
  %414 = vmatpush2.bf16.msra.mxu0 0
  %415 = vmatprep.subr.bf16.mxu0 0
  %416 = vmatpush2.bf16.msra.mxu0 0
  %417 = vmatprep.subr.bf16.mxu0 0
  %418 = vmatpush2.bf16.msra.mxu0 0
  %419 = vmatprep.subr.bf16.mxu0 0
  %420 = vmatpush2.bf16.msra.mxu0 0
  %421 = vmatprep.mubr.bf16.mxu0 0
  %422 = vmatmul.mubr.bf16.gmra.mxu0 %v387
  %v423 = vpop.f32.mrf.mxu0
  %v424 = vadd.f32 %v372, %v423
  %v425 = vpop.f32.mrf.mxu0
  %v426 = vpop.f32.mrf.mxu0
  %v427 = vadd.f32 %v372, %v426
  %v428 = vpop.f32.mrf.mxu0
  %429 = vdwg.mxu0
  %vm430 = vcmask 64512
  %431 = vst.msk [vmem:[%s10] sm:$0xff] %vm430, %v424
  %432 = vst.msk [vmem:[%s10 + $0x8] sm:$0xff] %vm430, %v427
  // Predicated region
  $region42: #{tpu_custom_call.1} parent=0 // pred_check
    _
  $region43: #{tpu_custom_call.1} parent=0 // pred_check_branch
    %434 = sbr.rel (0) target = $region45
  $region44: #{tpu_custom_call.1} parent=0 // pred_region
    _
  $region45: #{tpu_custom_call.1} parent=0 // pred_fallthru
    _
  // Predicated region
  $region46: #{tpu_custom_call.1} parent=0 // pred_check
    _
  $region47: #{tpu_custom_call.1} parent=0 // pred_check_branch
    %436 = sbr.rel (0) target = $region49
  $region48: #{tpu_custom_call.1} parent=0 // pred_region
    _
  $region49: #{tpu_custom_call.1} parent=0 // pred_fallthru
    _

// kernel: tpu_custom_call.1
$region0: #{tpu_custom_call.1}
  #allocation0 [shape = 'u32[]', space=smem, size = 0x4, offset = 0x4, fixed_abs, tag = 'smem constant byte address 0x4 - core index']
  #allocation1 [shape = 'u32[144,128]{1,0:T(1,128)}', space=vmem, size = 0x12000, scoped, tag = 'internal scratch']
  %s0 = inlined_call_operand.vmem [shape: f32[16,32], index: 0, kind: input, shape index: {}]
  %s1 = inlined_call_operand.vmem [shape: f32[16,32], index: 1, kind: input, shape index: {}]
  %s2 = inlined_call_operand.vmem [shape: bf16[32,128], index: 2, kind: input, shape index: {}]
  %s3 = inlined_call_operand.vmem [shape: bf16[32,128], index: 3, kind: input, shape index: {}]
  %s4 = inlined_call_operand.vmem [shape: bf16[32,128], index: 4, kind: input, shape index: {}]
  %s5 = inlined_call_operand.vmem [shape: f32[1,128], index: 5, kind: input, shape index: {}]
  %s6 = inlined_call_operand.vmem [shape: bf16[128,32], index: 6, kind: input, shape index: {}]
  %s7 = inlined_call_operand.vmem [shape: f32[1,32], index: 7, kind: input, shape index: {}]
  %s8 = inlined_call_operand.vmem [shape: bf16[32,8], index: 8, kind: input, shape index: {}]
  %s9 = inlined_call_operand.vmem [shape: f32[1,8], index: 9, kind: input, shape index: {}]
  %s10 = inlined_call_operand.vmem [shape: f32[16,8], index: 10, kind: output, shape index: {}]
  %s11 = sld [smem:[#allocation0]]
  $region50: #{tpu_custom_call.1} parent=0
    _
  %s13 = ssub.s32 1, %s11
  %s14 = scalar_select 0, %s13, %s11
  // Predicated region
  $region2: #{tpu_custom_call.1} parent=0 // pred_check
    _
  $region3: #{tpu_custom_call.1} parent=0 // pred_check_branch
    %16 = sbr.rel (0) target = $region5
  $region4: #{tpu_custom_call.1} parent=0 // pred_region
    _
  $region5: #{tpu_custom_call.1} parent=0 // pred_fallthru
    _
  // Predicated region
  $region6: #{tpu_custom_call.1} parent=0 // pred_check
    _
  $region7: #{tpu_custom_call.1} parent=0 // pred_check_branch
    %18 = sbr.rel (0) target = $region9
  $region8: #{tpu_custom_call.1} parent=0 // pred_region
    _
  $region9: #{tpu_custom_call.1} parent=0 // pred_fallthru
    _
  // Predicated region
  $region10: #{tpu_custom_call.1} parent=0 // pred_check
    _
  $region11: #{tpu_custom_call.1} parent=0 // pred_check_branch
    %20 = sbr.rel (0) target = $region13
  $region12: #{tpu_custom_call.1} parent=0 // pred_region
    _
  $region13: #{tpu_custom_call.1} parent=0 // pred_fallthru
    _
  // Predicated region
  $region14: #{tpu_custom_call.1} parent=0 // pred_check
    _
  $region15: #{tpu_custom_call.1} parent=0 // pred_check_branch
    %22 = sbr.rel (0) target = $region17
  $region16: #{tpu_custom_call.1} parent=0 // pred_region
    _
  $region17: #{tpu_custom_call.1} parent=0 // pred_fallthru
    _
  // Predicated region
  $region18: #{tpu_custom_call.1} parent=0 // pred_check
    _
  $region19: #{tpu_custom_call.1} parent=0 // pred_check_branch
    %24 = sbr.rel (0) target = $region21
  $region20: #{tpu_custom_call.1} parent=0 // pred_region
    _
  $region21: #{tpu_custom_call.1} parent=0 // pred_fallthru
    _
  // Predicated region
  $region22: #{tpu_custom_call.1} parent=0 // pred_check
    _
  $region23: #{tpu_custom_call.1} parent=0 // pred_check_branch
    %26 = sbr.rel (0) target = $region25
  $region24: #{tpu_custom_call.1} parent=0 // pred_region
    _
  $region25: #{tpu_custom_call.1} parent=0 // pred_fallthru
    _
  // Predicated region
  $region26: #{tpu_custom_call.1} parent=0 // pred_check
    _
  $region27: #{tpu_custom_call.1} parent=0 // pred_check_branch
    %28 = sbr.rel (0) target = $region29
  $region28: #{tpu_custom_call.1} parent=0 // pred_region
    _
  $region29: #{tpu_custom_call.1} parent=0 // pred_fallthru
    _
  // Predicated region
  $region30: #{tpu_custom_call.1} parent=0 // pred_check
    _
  $region31: #{tpu_custom_call.1} parent=0 // pred_check_branch
    %30 = sbr.rel (0) target = $region33
  $region32: #{tpu_custom_call.1} parent=0 // pred_region
    _
  $region33: #{tpu_custom_call.1} parent=0 // pred_fallthru
    _
  // Predicated region
  $region34: #{tpu_custom_call.1} parent=0 // pred_check
    _
  $region35: #{tpu_custom_call.1} parent=0 // pred_check_branch
    %32 = sbr.rel (0) target = $region37
  $region36: #{tpu_custom_call.1} parent=0 // pred_region
    _
  $region37: #{tpu_custom_call.1} parent=0 // pred_fallthru
    _
  // Predicated region
  $region38: #{tpu_custom_call.1} parent=0 // pred_check
    _
  $region39: #{tpu_custom_call.1} parent=0 // pred_check_branch
    %34 = sbr.rel (0) target = $region41
  $region40: #{tpu_custom_call.1} parent=0 // pred_region
    _
  $region41: #{tpu_custom_call.1} parent=0 // pred_fallthru
    _
  %v36 = vld [vmem:[%s0] sm:$0xff]
  %v37 = vld [vmem:[%s0 + $0x8] sm:$0xff]
  %v38 = vld [vmem:[%s1] sm:$0xff]
  %v39 = vld [vmem:[%s1 + $0x8] sm:$0xff]
  %v40 = vpack.c.bf16 %v37, %v36
  %v41 = vpack.c.bf16 %v39, %v38
  %v42 = vmul.f32 %v36, %v38
  %v43 = vmul.f32 %v37, %v39
  %v44 = vpack.c.bf16 %v43, %v42
  %v45 = vld [vmem:[%s2] sm:$0xf]
  %v46 = vld [vmem:[%s2 + $0x4] sm:$0xf]
  %v47 = vld [vmem:[%s2 + $0x8] sm:$0xf]
  %v48 = vld [vmem:[%s2 + $0xc] sm:$0xf]
  %v49 = vld [vmem:[%s3] sm:$0xf]
  %v50 = vld [vmem:[%s3 + $0x4] sm:$0xf]
  %v51 = vld [vmem:[%s3 + $0x8] sm:$0xf]
  %v52 = vld [vmem:[%s3 + $0xc] sm:$0xf]
  %v57 = vunpack.c.l.b16 %v49
  %v58 = vunpack.c.l.b16 %v50
  %v59 = vunpack.c.l.b16 %v51
  %v60 = vunpack.c.l.b16 %v52
  %v61 = vpack.c.b16 %v58, %v57
  %v62 = vpack.c.b16 %v60, %v59
  %vm65 = vcmask 261120
  %v67 = vsel %vm65, %v41, 0
  %69 = vmatprep.subr.bf16.mxu0 0
  %70 = vmatpush1.bf16.msra.mxu0 0
  %71 = vmatprep.subr.bf16.mxu0 0
  %72 = vmatpush1.bf16.msra.mxu0 0
  %73 = vmatprep.subr.bf16.mxu0 0
  %74 = vmatpush1.bf16.msra.mxu0 0
  %75 = vmatprep.subr.bf16.mxu0 0
  %76 = vmatpush1.bf16.msra.mxu0 0
  %77 = vmatprep.subr.bf16.mxu0 0
  %78 = vmatpush1.bf16.msra.mxu0 0
  %79 = vmatprep.subr.bf16.mxu0 0
  %80 = vmatpush1.bf16.msra.mxu0 0
  %81 = vmatprep.subr.bf16.mxu0 0
  %82 = vmatpush1.bf16.msra.mxu0 %v62
  %83 = vmatprep.subr.bf16.mxu0 0
  %84 = vmatpush1.bf16.msra.mxu0 %v61
  %85 = vmatprep.subr.bf16.mxu0 0
  %86 = vmatpush2.bf16.msra.mxu0 0
  %87 = vmatprep.subr.bf16.mxu0 0
  %88 = vmatpush2.bf16.msra.mxu0 0
  %89 = vmatprep.subr.bf16.mxu0 0
  %90 = vmatpush2.bf16.msra.mxu0 0
  %91 = vmatprep.subr.bf16.mxu0 0
  %92 = vmatpush2.bf16.msra.mxu0 0
  %93 = vmatprep.subr.bf16.mxu0 0
  %94 = vmatpush2.bf16.msra.mxu0 0
  %95 = vmatprep.subr.bf16.mxu0 0
  %96 = vmatpush2.bf16.msra.mxu0 0
  %97 = vmatprep.subr.bf16.mxu0 0
  %98 = vmatpush2.bf16.msra.mxu0 0
  %99 = vmatprep.subr.bf16.mxu0 0
  %100 = vmatpush2.bf16.msra.mxu0 0
  %101 = vmatprep.mubr.bf16.mxu0 0
  %102 = vmatmul.mubr.bf16.gmra.mxu0 %v67
  %v103 = vpop.f32.mrf.mxu0
  %v104 = vadd.f32 0.0, %v103
  %v105 = vpop.f32.mrf.mxu0
  %v106 = vpop.f32.mrf.mxu0
  %v107 = vadd.f32 0.0, %v106
  %v108 = vpop.f32.mrf.mxu0
  %109 = vdwg.mxu0
  %v114 = vunpack.c.l.b16 %v45
  %v115 = vunpack.c.l.b16 %v46
  %v116 = vunpack.c.l.b16 %v47
  %v117 = vunpack.c.l.b16 %v48
  %v118 = vpack.c.b16 %v115, %v114
  %v119 = vpack.c.b16 %v117, %v116
  %v123 = vsel %vm65, %v40, 0
  %125 = vmatprep.subr.bf16.mxu0 0
  %126 = vmatpush1.bf16.msra.mxu0 0
  %127 = vmatprep.subr.bf16.mxu0 0
  %128 = vmatpush1.bf16.msra.mxu0 0
  %129 = vmatprep.subr.bf16.mxu0 0
  %130 = vmatpush1.bf16.msra.mxu0 0
  %131 = vmatprep.subr.bf16.mxu0 0
  %132 = vmatpush1.bf16.msra.mxu0 0
  %133 = vmatprep.subr.bf16.mxu0 0
  %134 = vmatpush1.bf16.msra.mxu0 0
  %135 = vmatprep.subr.bf16.mxu0 0
  %136 = vmatpush1.bf16.msra.mxu0 0
  %137 = vmatprep.subr.bf16.mxu0 0
  %138 = vmatpush1.bf16.msra.mxu0 %v119
  %139 = vmatprep.subr.bf16.mxu0 0
  %140 = vmatpush1.bf16.msra.mxu0 %v118
  %141 = vmatprep.subr.bf16.mxu0 0
  %142 = vmatpush2.bf16.msra.mxu0 0
  %143 = vmatprep.subr.bf16.mxu0 0
  %144 = vmatpush2.bf16.msra.mxu0 0
  %145 = vmatprep.subr.bf16.mxu0 0
  %146 = vmatpush2.bf16.msra.mxu0 0
  %147 = vmatprep.subr.bf16.mxu0 0
  %148 = vmatpush2.bf16.msra.mxu0 0
  %149 = vmatprep.subr.bf16.mxu0 0
  %150 = vmatpush2.bf16.msra.mxu0 0
  %151 = vmatprep.subr.bf16.mxu0 0
  %152 = vmatpush2.bf16.msra.mxu0 0
  %153 = vmatprep.subr.bf16.mxu0 0
  %154 = vmatpush2.bf16.msra.mxu0 0
  %155 = vmatprep.subr.bf16.mxu0 0
  %156 = vmatpush2.bf16.msra.mxu0 0
  %157 = vmatprep.mubr.bf16.mxu0 0
  %158 = vmatmul.mubr.bf16.gmra.mxu0 %v123
  %v159 = vpop.f32.mrf.mxu0
  %v160 = vadd.f32 %v104, %v159
  %v161 = vpop.f32.mrf.mxu0
  %v162 = vpop.f32.mrf.mxu0
  %v163 = vadd.f32 %v107, %v162
  %v164 = vpop.f32.mrf.mxu0
  %165 = vdwg.mxu0
  %v166 = vld [vmem:[%s4] sm:$0xf]
  %v167 = vld [vmem:[%s4 + $0x4] sm:$0xf]
  %v168 = vld [vmem:[%s4 + $0x8] sm:$0xf]
  %v169 = vld [vmem:[%s4 + $0xc] sm:$0xf]
  %v174 = vunpack.c.l.b16 %v166
  %v175 = vunpack.c.l.b16 %v167
  %v176 = vunpack.c.l.b16 %v168
  %v177 = vunpack.c.l.b16 %v169
  %v178 = vpack.c.b16 %v175, %v174
  %v179 = vpack.c.b16 %v177, %v176
  %v183 = vsel %vm65, %v44, 0
  %185 = vmatprep.subr.bf16.mxu0 0
  %186 = vmatpush1.bf16.msra.mxu0 0
  %187 = vmatprep.subr.bf16.mxu0 0
  %188 = vmatpush1.bf16.msra.mxu0 0
  %189 = vmatprep.subr.bf16.mxu0 0
  %190 = vmatpush1.bf16.msra.mxu0 0
  %191 = vmatprep.subr.bf16.mxu0 0
  %192 = vmatpush1.bf16.msra.mxu0 0
  %193 = vmatprep.subr.bf16.mxu0 0
  %194 = vmatpush1.bf16.msra.mxu0 0
  %195 = vmatprep.subr.bf16.mxu0 0
  %196 = vmatpush1.bf16.msra.mxu0 0
  %197 = vmatprep.subr.bf16.mxu0 0
  %198 = vmatpush1.bf16.msra.mxu0 %v179
  %199 = vmatprep.subr.bf16.mxu0 0
  %200 = vmatpush1.bf16.msra.mxu0 %v178
  %201 = vmatprep.subr.bf16.mxu0 0
  %202 = vmatpush2.bf16.msra.mxu0 0
  %203 = vmatprep.subr.bf16.mxu0 0
  %204 = vmatpush2.bf16.msra.mxu0 0
  %205 = vmatprep.subr.bf16.mxu0 0
  %206 = vmatpush2.bf16.msra.mxu0 0
  %207 = vmatprep.subr.bf16.mxu0 0
  %208 = vmatpush2.bf16.msra.mxu0 0
  %209 = vmatprep.subr.bf16.mxu0 0
  %210 = vmatpush2.bf16.msra.mxu0 0
  %211 = vmatprep.subr.bf16.mxu0 0
  %212 = vmatpush2.bf16.msra.mxu0 0
  %213 = vmatprep.subr.bf16.mxu0 0
  %214 = vmatpush2.bf16.msra.mxu0 0
  %215 = vmatprep.subr.bf16.mxu0 0
  %216 = vmatpush2.bf16.msra.mxu0 0
  %217 = vmatprep.mubr.bf16.mxu0 0
  %218 = vmatmul.mubr.bf16.gmra.mxu0 %v183
  %v219 = vpop.f32.mrf.mxu0
  %v220 = vadd.f32 0.0, %v219
  %v221 = vpop.f32.mrf.mxu0
  %v222 = vpop.f32.mrf.mxu0
  %v223 = vadd.f32 0.0, %v222
  %v224 = vpop.f32.mrf.mxu0
  %225 = vdwg.mxu0
  %v226 = vadd.f32 %v160, %v220
  %v227 = vadd.f32 %v163, %v223
  %v228 = vld [vmem:[%s5] sm:$0x1]
  %v230 = vlaneseq
  %v231 = vshrl.u32 %v230, 7
  %v232 = vsub.s32 0, %v231
  %v233 = vrot.slane %v228, %v232
  %v235 = vadd.f32 %v226, %v233
  %v236 = vadd.f32 %v227, %v233
  %v237 = vsub.f32 0.0, %v235
  %v238 = vsub.f32 0.0, %v236
  %v239 = vmul.f32 %v237, 1.442695
  %v240 = vpow.pop %v239
  %v241 = vmul.f32 %v238, 1.442695
  %v242 = vpow.pop %v241
  %v243 = vadd.f32 %v240, 1.0
  %v244 = vadd.f32 %v242, 1.0
  %v245 = vrcp.pop %v243
  %v246 = vrcp.pop %v244
  %v247 = vpack.c.bf16 %v246, %v245
  %v248 = vld [vmem:[%s6] sm:$0xf]
  %v249 = vld [vmem:[%s6 + $0x4] sm:$0xf]
  %v250 = vld [vmem:[%s6 + $0x8] sm:$0xf]
  %v251 = vld [vmem:[%s6 + $0xc] sm:$0xf]
  %v252 = vld [vmem:[%s6 + $0x10] sm:$0xf]
  %v253 = vld [vmem:[%s6 + $0x14] sm:$0xf]
  %v254 = vld [vmem:[%s6 + $0x18] sm:$0xf]
  %v255 = vld [vmem:[%s6 + $0x1c] sm:$0xf]
  %v256 = vld [vmem:[%s6 + $0x20] sm:$0xf]
  %v257 = vld [vmem:[%s6 + $0x24] sm:$0xf]
  %v258 = vld [vmem:[%s6 + $0x28] sm:$0xf]
  %v259 = vld [vmem:[%s6 + $0x2c] sm:$0xf]
  %v260 = vld [vmem:[%s6 + $0x30] sm:$0xf]
  %v261 = vld [vmem:[%s6 + $0x34] sm:$0xf]
  %v262 = vld [vmem:[%s6 + $0x38] sm:$0xf]
  %v263 = vld [vmem:[%s6 + $0x3c] sm:$0xf]
  %v264 = vld [vmem:[%s7] sm:$0x1]
  %v266 = vlaneseq
  %v267 = vshrl.u32 %v266, 7
  %v268 = vsub.s32 0, %v267
  %v269 = vrot.slane %v264, %v268
  %v287 = vunpack.c.l.b16 %v248
  %v288 = vunpack.c.l.b16 %v249
  %v289 = vunpack.c.l.b16 %v250
  %v290 = vunpack.c.l.b16 %v251
  %v291 = vunpack.c.l.b16 %v252
  %v292 = vunpack.c.l.b16 %v253
  %v293 = vunpack.c.l.b16 %v254
  %v294 = vunpack.c.l.b16 %v255
  %v295 = vunpack.c.l.b16 %v256
  %v296 = vunpack.c.l.b16 %v257
  %v297 = vunpack.c.l.b16 %v258
  %v298 = vunpack.c.l.b16 %v259
  %v299 = vunpack.c.l.b16 %v260
  %v300 = vunpack.c.l.b16 %v261
  %v301 = vunpack.c.l.b16 %v262
  %v302 = vunpack.c.l.b16 %v263
  %v303 = vpack.c.b16 %v288, %v287
  %v304 = vpack.c.b16 %v290, %v289
  %v305 = vpack.c.b16 %v292, %v291
  %v306 = vpack.c.b16 %v294, %v293
  %v307 = vpack.c.b16 %v296, %v295
  %v308 = vpack.c.b16 %v298, %v297
  %v309 = vpack.c.b16 %v300, %v299
  %v310 = vpack.c.b16 %v302, %v301
  %319 = vmatprep.subr.bf16.mxu0 0
  %320 = vmatpush1.bf16.msra.mxu0 %v310
  %321 = vmatprep.subr.bf16.mxu0 0
  %322 = vmatpush1.bf16.msra.mxu0 %v309
  %323 = vmatprep.subr.bf16.mxu0 0
  %324 = vmatpush1.bf16.msra.mxu0 %v308
  %325 = vmatprep.subr.bf16.mxu0 0
  %326 = vmatpush1.bf16.msra.mxu0 %v307
  %327 = vmatprep.subr.bf16.mxu0 0
  %328 = vmatpush1.bf16.msra.mxu0 %v306
  %329 = vmatprep.subr.bf16.mxu0 0
  %330 = vmatpush1.bf16.msra.mxu0 %v305
  %331 = vmatprep.subr.bf16.mxu0 0
  %332 = vmatpush1.bf16.msra.mxu0 %v304
  %333 = vmatprep.subr.bf16.mxu0 0
  %334 = vmatpush1.bf16.msra.mxu0 %v303
  %335 = vmatprep.subr.bf16.mxu0 0
  %336 = vmatpush2.bf16.msra.mxu0 0
  %337 = vmatprep.subr.bf16.mxu0 0
  %338 = vmatpush2.bf16.msra.mxu0 0
  %339 = vmatprep.subr.bf16.mxu0 0
  %340 = vmatpush2.bf16.msra.mxu0 0
  %341 = vmatprep.subr.bf16.mxu0 0
  %342 = vmatpush2.bf16.msra.mxu0 0
  %343 = vmatprep.subr.bf16.mxu0 0
  %344 = vmatpush2.bf16.msra.mxu0 0
  %345 = vmatprep.subr.bf16.mxu0 0
  %346 = vmatpush2.bf16.msra.mxu0 0
  %347 = vmatprep.subr.bf16.mxu0 0
  %348 = vmatpush2.bf16.msra.mxu0 0
  %349 = vmatprep.subr.bf16.mxu0 0
  %350 = vmatpush2.bf16.msra.mxu0 0
  %351 = vmatprep.mubr.bf16.mxu0 0
  %352 = vmatmul.mubr.bf16.gmra.mxu0 %v247
  %v353 = vpop.f32.mrf.mxu0
  %v354 = vadd.f32 %v269, %v353
  %v355 = vpop.f32.mrf.mxu0
  %v356 = vpop.f32.mrf.mxu0
  %v357 = vadd.f32 %v269, %v356
  %v358 = vpop.f32.mrf.mxu0
  %359 = vdwg.mxu0
  %v360 = vmax.f32 %v354, 0.0
  %v361 = vmax.f32 %v357, 0.0
  %v362 = vpack.c.bf16 %v361, %v360
  %v363 = vld [vmem:[%s8] sm:$0xf]
  %v364 = vld [vmem:[%s8 + $0x4] sm:$0xf]
  %v365 = vld [vmem:[%s8 + $0x8] sm:$0xf]
  %v366 = vld [vmem:[%s8 + $0xc] sm:$0xf]
  %v367 = vld [vmem:[%s9] sm:$0x1]
  %v369 = vlaneseq
  %v370 = vshrl.u32 %v369, 7
  %v371 = vsub.s32 0, %v370
  %v372 = vrot.slane %v367, %v371
  %v378 = vunpack.c.l.b16 %v363
  %v379 = vunpack.c.l.b16 %v364
  %v380 = vunpack.c.l.b16 %v365
  %v381 = vunpack.c.l.b16 %v366
  %v382 = vpack.c.b16 %v379, %v378
  %v383 = vpack.c.b16 %v381, %v380
  %v387 = vsel %vm65, %v362, 0
  %389 = vmatprep.subr.bf16.mxu0 0
  %390 = vmatpush1.bf16.msra.mxu0 0
  %391 = vmatprep.subr.bf16.mxu0 0
  %392 = vmatpush1.bf16.msra.mxu0 0
  %393 = vmatprep.subr.bf16.mxu0 0
  %394 = vmatpush1.bf16.msra.mxu0 0
  %395 = vmatprep.subr.bf16.mxu0 0
  %396 = vmatpush1.bf16.msra.mxu0 0
  %397 = vmatprep.subr.bf16.mxu0 0
  %398 = vmatpush1.bf16.msra.mxu0 0
  %399 = vmatprep.subr.bf16.mxu0 0
  %400 = vmatpush1.bf16.msra.mxu0 0
  %401 = vmatprep.subr.bf16.mxu0 0
  %402 = vmatpush1.bf16.msra.mxu0 %v383
  %403 = vmatprep.subr.bf16.mxu0 0
  %404 = vmatpush1.bf16.msra.mxu0 %v382
  %405 = vmatprep.subr.bf16.mxu0 0
  %406 = vmatpush2.bf16.msra.mxu0 0
  %407 = vmatprep.subr.bf16.mxu0 0
  %408 = vmatpush2.bf16.msra.mxu0 0
  %409 = vmatprep.subr.bf16.mxu0 0
  %410 = vmatpush2.bf16.msra.mxu0 0
  %411 = vmatprep.subr.bf16.mxu0 0
  %412 = vmatpush2.bf16.msra.mxu0 0
  %413 = vmatprep.subr.bf16.mxu0 0
  %414 = vmatpush2.bf16.msra.mxu0 0
  %415 = vmatprep.subr.bf16.mxu0 0
  %416 = vmatpush2.bf16.msra.mxu0 0
  %417 = vmatprep.subr.bf16.mxu0 0
  %418 = vmatpush2.bf16.msra.mxu0 0
  %419 = vmatprep.subr.bf16.mxu0 0
  %420 = vmatpush2.bf16.msra.mxu0 0
  %421 = vmatprep.mubr.bf16.mxu0 0
  %422 = vmatmul.mubr.bf16.gmra.mxu0 %v387
  %v423 = vpop.f32.mrf.mxu0
  %v424 = vadd.f32 %v372, %v423
  %v425 = vpop.f32.mrf.mxu0
  %v426 = vpop.f32.mrf.mxu0
  %v427 = vadd.f32 %v372, %v426
  %v428 = vpop.f32.mrf.mxu0
  %429 = vdwg.mxu0
  %vm430 = vcmask 64512
  %431 = vst.msk [vmem:[%s10] sm:$0xff] %vm430, %v424
  %432 = vst.msk [vmem:[%s10 + $0x8] sm:$0xff] %vm430, %v427
  // Predicated region
  $region42: #{tpu_custom_call.1} parent=0 // pred_check
    _
  $region43: #{tpu_custom_call.1} parent=0 // pred_check_branch
    %434 = sbr.rel (0) target = $region45
  $region44: #{tpu_custom_call.1} parent=0 // pred_region
    _
  $region45: #{tpu_custom_call.1} parent=0 // pred_fallthru
    _
  // Predicated region
  $region46: #{tpu_custom_call.1} parent=0 // pred_check
    _
  $region47: #{tpu_custom_call.1} parent=0 // pred_check_branch
    %436 = sbr.rel (0) target = $region49
  $region48: #{tpu_custom_call.1} parent=0 // pred_region
    _
  $region49: #{tpu_custom_call.1} parent=0 // pred_fallthru
    _

</llo_original>
